<compile_context>
chip_gen: v5e
topology: v5e:2x2
jax: 0.10.0
libtpu: 0.0.40
codegen_flags: <defaults>
</compile_context>

<pallas_src>
import functools

import jax
import jax.numpy as jnp
from jax.experimental import pallas as pl
from jax.experimental.pallas import tpu as pltpu

LANES = 128        # TPU lane width; packed buffers use this as their last dim
_BIAS_ROWS = 8     # sublane-aligned bias block (rows 0..2 used, rest zero)


def policy_kernel(x_ref, w_ref, b_ref, out_ref, *, input_size, output_size):
    """Fused actor-critic forward for one batch block.

    x_ref  : [Bb, input_size]  f32
    w_ref  : [3*128, 128]      bf16  (fused layer1 | block-diag layer2 | block-diag heads)
    b_ref  : [8, 128]          f32   (rows 0..2 = fused b1, b2, bh)
    out_ref: [Bb, 128]         f32   (lanes: action probs | state value | zeros)
    """
    # bf16 operands for the MXU; accumulation stays f32 via preferred_element_type.
    x = x_ref[...].astype(jnp.bfloat16)

    w1 = w_ref[0:input_size, :]            # [input_size, 128]  layer-1 (actor | critic)
    w2 = w_ref[LANES:2 * LANES, :]         # [128, 128]         block-diag layer-2
    wh = w_ref[2 * LANES:3 * LANES, :]     # [128, 128]         block-diag heads
    b1 = b_ref[0:1, :]
    b2 = b_ref[1:2, :]
    bh = b_ref[2:3, :]

    # Three fused matmuls + two tanh layers (all element-wise math in f32).
    # Padded lanes stay exactly 0 through every layer.
    h1 = jnp.tanh(jnp.dot(x, w1, preferred_element_type=jnp.float32) + b1)
    h2 = jnp.tanh(jnp.dot(h1.astype(jnp.bfloat16), w2,
                          preferred_element_type=jnp.float32) + b2)
    head = jnp.dot(h2.astype(jnp.bfloat16), wh,
                   preferred_element_type=jnp.float32) + bh      # [Bb, 128]
    # head lanes: [0, output_size)   -> action logits
    #             output_size        -> state value
    #             (output_size, 128) -> zero padding

    lane = jax.lax.broadcasted_iota(jnp.int32, head.shape, 1)
    is_logit = lane < output_size
    is_value = lane == output_size

    # Masked, numerically-stable softmax over the logit lanes.
    neg_big = jnp.float32(-1e30)
    logits = jnp.where(is_logit, head, neg_big)
    m = jnp.max(logits, axis=-1, keepdims=True)
    e = jnp.exp(logits - m)                      # masked lanes -> exactly 0
    denom = jnp.sum(e, axis=-1, keepdims=True)
    probs = e / denom                            # EXACT divide: rows sum to 1

    # Single lane-dense output slab: probs | value | zeros.
    # probs is exactly 0 on non-logit lanes, so a plain add suffices.
    out_ref[...] = probs + jnp.where(is_value, head, jnp.float32(0.0))


def pack_params(p, input_size, output_size, hidden_size):
    """Host-side (one-time) packing of all 12 weight/bias tensors.

    Returns:
      w_pack: [3*128, 128] bf16 — fused layer-1, block-diag layer-2, block-diag heads.
      b_pack: [8, 128]     f32  — rows 0..2 = fused b1, b2, bh.
    """
    H = hidden_size
    assert input_size <= LANES, "input_size must fit in one 128-lane tile"
    assert 2 * H <= LANES, "2*hidden_size must fit in one 128-lane tile"
    assert output_size + 1 <= LANES, "output_size+1 must fit in one 128-lane tile"
    assert input_size % 8 == 0, "input_size must be sublane-aligned (multiple of 8)"

    w1 = jnp.zeros((LANES, LANES), jnp.float32)
    w1 = w1.at[:input_size, :H].set(p["aw1"])
    w1 = w1.at[:input_size, H:2 * H].set(p["cw1"])

    w2 = jnp.zeros((LANES, LANES), jnp.float32)
    w2 = w2.at[:H, :H].set(p["aw2"])
    w2 = w2.at[H:2 * H, H:2 * H].set(p["cw2"])

    wh = jnp.zeros((LANES, LANES), jnp.float32)
    wh = wh.at[:H, :output_size].set(p["ahw"])
    wh = wh.at[H:2 * H, output_size:output_size + 1].set(p["vhw"])

    w_pack = jnp.concatenate([w1, w2, wh], axis=0).astype(jnp.bfloat16)   # [384, 128]

    b = jnp.zeros((_BIAS_ROWS, LANES), jnp.float32)
    b = b.at[0, :H].set(p["ab1"][0]).at[0, H:2 * H].set(p["cb1"][0])
    b = b.at[1, :H].set(p["ab2"][0]).at[1, H:2 * H].set(p["cb2"][0])
    b = b.at[2, :output_size].set(p["ahb"][0])
    b = b.at[2, output_size:output_size + 1].set(p["vhb"][0])
    return w_pack, b


def policy_forward(state, w_pack, b_pack, *, input_size, output_size,
                   hidden_size, block_b=256):
    """state: [B, input_size] f32; (w_pack, b_pack) = pack_params(...)."""
    B = state.shape[0]
    assert state.shape[1] == input_size
    bb = min(B, block_b)                 # batch rows per grid step
    grid = (pl.cdiv(B, bb),)

    H = hidden_size
    flops = 2 * B * (input_size * 2 * H + (2 * H) * (2 * H) + 2 * H * (output_size + 1))
    transcendentals = B * (4 * H + output_size)                # 2 tanh layers + exp
    bytes_accessed = (4 * B * input_size                       # x in  (f32)
                      + 2 * int(w_pack.size)                   # weights (bf16)
                      + 4 * int(b_pack.size)                   # biases  (f32)
                      + 4 * B * LANES)                         # out   (f32)

    out = pl.pallas_call(
        functools.partial(policy_kernel,
                          input_size=input_size, output_size=output_size),
        out_shape=jax.ShapeDtypeStruct((B, LANES), jnp.float32),
        grid=grid,
        in_specs=[
            pl.BlockSpec((bb, input_size), lambda i: (i, 0)),
            # Weights/biases: same block every step -> DMA'd once, VMEM-resident.
            pl.BlockSpec((3 * LANES, LANES), lambda i: (0, 0)),
            pl.BlockSpec((_BIAS_ROWS, LANES), lambda i: (0, 0)),
        ],
        out_specs=pl.BlockSpec((bb, LANES), lambda i: (i, 0)),
        compiler_params=pltpu.CompilerParams(dimension_semantics=("parallel",)),
        cost_estimate=pl.CostEstimate(flops=flops,
                                      transcendentals=transcendentals,
                                      bytes_accessed=bytes_accessed),
    )(state.astype(jnp.float32), w_pack, b_pack)

    action_prob = out[:, :output_size]
    state_values = out[:, output_size:output_size + 1]
    return action_prob, state_values


def init_params(key, input_size, output_size, hidden_size):
    """Deterministic uniform init (PyTorch-Linear-style bounds). Weights stored
    [in_features, out_features]; biases as [1, out_features]."""
    def linear(key, fan_in, fan_out):
        k_w, k_b = jax.random.split(key)
        bound = 1.0 / jnp.sqrt(jnp.float32(fan_in))
        w = jax.random.uniform(k_w, (fan_in, fan_out), jnp.float32, -bound, bound)
        b = jax.random.uniform(k_b, (1, fan_out), jnp.float32, -bound, bound)
        return w, b

    keys = jax.random.split(key, 6)
    aw1, ab1 = linear(keys[0], input_size, hidden_size)
    aw2, ab2 = linear(keys[1], hidden_size, hidden_size)
    cw1, cb1 = linear(keys[2], input_size, hidden_size)
    cw2, cb2 = linear(keys[3], hidden_size, hidden_size)
    ahw, ahb = linear(keys[4], hidden_size, output_size)
    vhw, vhb = linear(keys[5], hidden_size, 1)
    return dict(aw1=aw1, ab1=ab1, aw2=aw2, ab2=ab2,
                cw1=cw1, cb1=cb1, cw2=cw2, cb2=cb2,
                ahw=ahw, ahb=ahb, vhw=vhw, vhb=vhb)


def policy_forward_ref(state, p):
    """Pure-JAX f32 reference (unfused), for correctness checking."""
    a = jnp.tanh(state @ p["aw1"] + p["ab1"])
    a = jnp.tanh(a @ p["aw2"] + p["ab2"])
    c = jnp.tanh(state @ p["cw1"] + p["cb1"])
    c = jnp.tanh(c @ p["cw2"] + p["cb2"])
    probs = jax.nn.softmax(a @ p["ahw"] + p["ahb"], axis=-1)
    values = c @ p["vhw"] + p["vhb"]
    return probs, values


if __name__ == "__main__":
    input_size, output_size, hidden_size = 16, 4, 32
    batch = 8

    key = jax.random.PRNGKey(0)
    k_params, k_state = jax.random.split(key)
    params = init_params(k_params, input_size, output_size, hidden_size)
    w_pack, b_pack = pack_params(params, input_size, output_size, hidden_size)
    state = jax.random.normal(k_state, (batch, input_size), jnp.float32)

    fwd = jax.jit(functools.partial(policy_forward,
                                    input_size=input_size,
                                    output_size=output_size,
                                    hidden_size=hidden_size))
    action_prob, state_values = fwd(state, w_pack, b_pack)
    jax.block_until_ready((action_prob, state_values))

    # sanity check against the pure-JAX f32 reference
    ref_prob, ref_val = policy_forward_ref(state, params)
    assert action_prob.shape == (batch, output_size)
    assert state_values.shape == (batch, 1)
    # bf16 MXU operands (f32 accumulate) -> small deviation from the f32 reference
    assert jnp.allclose(action_prob, ref_prob, atol=3e-2, rtol=3e-2)
    assert jnp.allclose(state_values, ref_val, atol=3e-2, rtol=3e-2)
    # exact softmax divide -> probability rows sum to 1 up to f32 rounding
    assert jnp.allclose(jnp.sum(action_prob, axis=-1), 1.0, atol=1e-4)

    print("KERNEL_OK")
</pallas_src>

<mosaic_0001>
module attributes {stable_mosaic.version = 11 : i64} {
  func.func @policy_kernel(%arg0: i32, %arg1: memref<8x16xf32, #tpu.memory_space<vmem>>, %arg2: memref<384x128xbf16, #tpu.memory_space<vmem>>, %arg3: memref<8x128xf32, #tpu.memory_space<vmem>>, %arg4: memref<8x128xf32, #tpu.memory_space<vmem>>) attributes {dimension_semantics = [#tpu.dimension_semantics<parallel>], iteration_bounds = array<i64: 1>, scalar_prefetch = 0 : i64, scratch_operands = 0 : i64, tpu.core_type = #tpu.core_type<tc>, window_params = [{transform_indices = @transform_0, window_bounds = array<i64: 8, 16>}, {pipeline_mode = #tpu.pipeline_mode<synchronous>, transform_indices = @transform_1, window_bounds = array<i64: 384, 128>}, {pipeline_mode = #tpu.pipeline_mode<synchronous>, transform_indices = @transform_2, window_bounds = array<i64: 8, 128>}, {transform_indices = @transform_3, window_bounds = array<i64: 8, 128>}]} {
    %c0 = arith.constant 0 : index
    %c0_0 = arith.constant 0 : index
    %0 = vector.load %arg1[%c0, %c0_0] : memref<8x16xf32, #tpu.memory_space<vmem>>, vector<8x16xf32>
    %1 = arith.truncf %0 : vector<8x16xf32> to vector<8x16xbf16>
    %c0_1 = arith.constant 0 : index
    %c0_2 = arith.constant 0 : index
    %2 = vector.load %arg2[%c0_1, %c0_2] : memref<384x128xbf16, #tpu.memory_space<vmem>>, vector<16x128xbf16>
    %c128 = arith.constant 128 : index
    %c0_3 = arith.constant 0 : index
    %3 = vector.load %arg2[%c128, %c0_3] : memref<384x128xbf16, #tpu.memory_space<vmem>>, vector<128x128xbf16>
    %c256 = arith.constant 256 : index
    %c0_4 = arith.constant 0 : index
    %4 = vector.load %arg2[%c256, %c0_4] : memref<384x128xbf16, #tpu.memory_space<vmem>>, vector<128x128xbf16>
    %c0_5 = arith.constant 0 : index
    %c0_6 = arith.constant 0 : index
    %5 = vector.load %arg3[%c0_5, %c0_6] : memref<8x128xf32, #tpu.memory_space<vmem>>, vector<1x128xf32>
    %c1 = arith.constant 1 : index
    %c0_7 = arith.constant 0 : index
    %6 = vector.load %arg3[%c1, %c0_7] : memref<8x128xf32, #tpu.memory_space<vmem>>, vector<1x128xf32>
    %c2 = arith.constant 2 : index
    %c0_8 = arith.constant 0 : index
    %7 = vector.load %arg3[%c2, %c0_8] : memref<8x128xf32, #tpu.memory_space<vmem>>, vector<1x128xf32>
    %cst = arith.constant dense<0.000000e+00> : vector<8x128xf32>
    %8 = tpu.matmul %1, %2, %cst {dimension_numbers = #tpu.dot_dimension_numbers<[1], [0], [0], [1], [0, 0, 1, 1], [], []>} : vector<8x16xbf16>, vector<16x128xbf16>, vector<8x128xf32> -> vector<8x128xf32>
    %9 = vector.broadcast %5 : vector<1x128xf32> to vector<8x128xf32>
    %10 = arith.addf %8, %9 : vector<8x128xf32>
    %11 = math.tanh %10 : vector<8x128xf32>
    %12 = arith.truncf %11 : vector<8x128xf32> to vector<8x128xbf16>
    %cst_9 = arith.constant dense<0.000000e+00> : vector<8x128xf32>
    %13 = tpu.matmul %12, %3, %cst_9 {dimension_numbers = #tpu.dot_dimension_numbers<[1], [0], [0], [1], [0, 0, 1, 1], [], []>} : vector<8x128xbf16>, vector<128x128xbf16>, vector<8x128xf32> -> vector<8x128xf32>
    %14 = vector.broadcast %6 : vector<1x128xf32> to vector<8x128xf32>
    %15 = arith.addf %13, %14 : vector<8x128xf32>
    %16 = math.tanh %15 : vector<8x128xf32>
    %17 = arith.truncf %16 : vector<8x128xf32> to vector<8x128xbf16>
    %cst_10 = arith.constant dense<0.000000e+00> : vector<8x128xf32>
    %18 = tpu.matmul %17, %4, %cst_10 {dimension_numbers = #tpu.dot_dimension_numbers<[1], [0], [0], [1], [0, 0, 1, 1], [], []>} : vector<8x128xbf16>, vector<128x128xbf16>, vector<8x128xf32> -> vector<8x128xf32>
    %19 = vector.broadcast %7 : vector<1x128xf32> to vector<8x128xf32>
    %20 = arith.addf %18, %19 : vector<8x128xf32>
    %21 = tpu.iota {dimensions = array<i32: 1>} : vector<8x128xi32>
    %c4_i32 = arith.constant 4 : i32
    %22 = vector.broadcast %c4_i32 : i32 to vector<8x128xi32>
    %23 = arith.cmpi slt, %21, %22 : vector<8x128xi32>
    %c4_i32_11 = arith.constant 4 : i32
    %24 = vector.broadcast %c4_i32_11 : i32 to vector<8x128xi32>
    %25 = arith.cmpi eq, %21, %24 : vector<8x128xi32>
    %cst_12 = arith.constant -1.000000e+30 : f32
    %26 = vector.broadcast %cst_12 : f32 to vector<8x128xf32>
    %27 = arith.select %23, %20, %26 : vector<8x128xi1>, vector<8x128xf32>
    %cst_13 = arith.constant dense<0xFF800000> : vector<8xf32>
    %28 = vector.multi_reduction <maximumf>, %27, %cst_13 [1] : vector<8x128xf32> to vector<8xf32>
    %29 = vector.shape_cast %28 : vector<8xf32> to vector<8x1xf32>
    %30 = vector.broadcast %29 : vector<8x1xf32> to vector<8x128xf32>
    %31 = arith.subf %27, %30 : vector<8x128xf32>
    %32 = math.exp %31 : vector<8x128xf32>
    %cst_14 = arith.constant dense<0.000000e+00> : vector<8xf32>
    %33 = vector.multi_reduction <add>, %32, %cst_14 [1] : vector<8x128xf32> to vector<8xf32>
    %34 = vector.shape_cast %33 : vector<8xf32> to vector<8x1xf32>
    %35 = vector.broadcast %34 : vector<8x1xf32> to vector<8x128xf32>
    %36 = arith.divf %32, %35 : vector<8x128xf32>
    %cst_15 = arith.constant 0.000000e+00 : f32
    %37 = vector.broadcast %cst_15 : f32 to vector<8x128xf32>
    %38 = arith.select %25, %20, %37 : vector<8x128xi1>, vector<8x128xf32>
    %39 = arith.addf %36, %38 : vector<8x128xf32>
    %c0_16 = arith.constant 0 : index
    %c0_17 = arith.constant 0 : index
    %40 = vector.load %arg4[%c0_16, %c0_17] : memref<8x128xf32, #tpu.memory_space<vmem>>, vector<8x128xf32>
    tpu.vector_store %arg4[%c0_16, %c0_17], %39 {strides = array<i32>} : memref<8x128xf32, #tpu.memory_space<vmem>>, vector<8x128xf32>,
    return
  }
  func.func @transform_0(%arg0: i32) -> (i32, i32) {
    %c0_i32 = arith.constant 0 : i32
    %c0_i32_0 = arith.constant 0 : i32
    return %arg0, %c0_i32 : i32, i32
  }
  func.func @transform_1(%arg0: i32) -> (i32, i32) {
    %c0_i32 = arith.constant 0 : i32
    %c0_i32_0 = arith.constant 0 : i32
    %c0_i32_1 = arith.constant 0 : i32
    return %c0_i32, %c0_i32_0 : i32, i32
  }
  func.func @transform_2(%arg0: i32) -> (i32, i32) {
    %c0_i32 = arith.constant 0 : i32
    %c0_i32_0 = arith.constant 0 : i32
    %c0_i32_1 = arith.constant 0 : i32
    return %c0_i32, %c0_i32_0 : i32, i32
  }
  func.func @transform_3(%arg0: i32) -> (i32, i32) {
    %c0_i32 = arith.constant 0 : i32
    %c0_i32_0 = arith.constant 0 : i32
    return %arg0, %c0_i32 : i32, i32
  }
}

</mosaic_0001>

<llo_original>
// kernel: policy_forward.1
$region0: #{policy_forward.1}
  #allocation0 [shape = 'u32[]', space=smem, size = 0x4, offset = 0x4, fixed_abs, tag = 'smem constant byte address 0x4 - core index']
  #allocation1 [shape = 'u32[72,128]{1,0:T(1,128)}', space=vmem, size = 0x9000, scoped, tag = 'internal scratch']
  %s0 = inlined_call_operand.hbm [shape: f32[8,16], index: 0, kind: input, shape index: {}]
  %s1 = inlined_call_operand.hbm [shape: bf16[384,128], index: 1, kind: input, shape index: {}]
  %s2 = inlined_call_operand.hbm [shape: f32[8,128], index: 2, kind: input, shape index: {}]
  %s3 = inlined_call_operand.vmem [shape: f32[8,128], index: 3, kind: output, shape index: {}]
  %s4 = sld [smem:[#allocation0]]
  $region34: #{policy_forward.1} parent=0
    _
  %s6 = ssub.s32 1, %s4
  %s7 = scalar_select 0, %s6, %s4
  $region1: #{policy_forward.1} parent=0
    #allocation2 [shape = 'u8[4096]{0}', space=vmem, size = 0x1000, scoped, tag = 'input window, operand 0, single buffered']
    #allocation3 [shape = 's32[1]{0}', space=sflag, size = 0x4, scoped, tag = 'scoped memory for policy_forward.1']
    #allocation4 [shape = 'u8[98304]{0}', space=vmem, size = 0x18000, scoped, tag = 'input window, operand 1, single buffered']
    #allocation5 [shape = 's32[1]{0}', space=sflag, size = 0x4, scoped, tag = 'scoped memory for policy_forward.1']
    #allocation6 [shape = 'u8[4096]{0}', space=vmem, size = 0x1000, scoped, tag = 'input window, operand 2, single buffered']
    %8 = vsyncpa [#allocation3], 0
    %9 = vsyncpa [#allocation5], 0
    // Predicated region
    $region2: #{policy_forward.1} parent=1 // pred_check
      _
    $region3: #{policy_forward.1} parent=1 // pred_check_branch
      %11 = sbr.rel (0) target = $region5
    $region4: #{policy_forward.1} parent=1 // pred_region
      %13 = vsyncadd [#allocation3], 0
      %s15 = sshll.u32 %s0, 4
      %s16 = int_to_ptr.hbm [resolvable:$true] %s15
      %s17 = sshll.u32 [#allocation2], 4
      %s18 = int_to_ptr.vmem [resolvable:$true] %s17
      %20 = dma.hbm_to_vmem [thread:$0]  %s16, 128, %s18, [#allocation3]
    $region5: #{policy_forward.1} parent=1 // pred_fallthru
      _
    // Predicated region
    $region6: #{policy_forward.1} parent=1 // pred_check
      _
    $region7: #{policy_forward.1} parent=1 // pred_check_branch
      %22 = sbr.rel (0) target = $region9
    $region8: #{policy_forward.1} parent=1 // pred_region
      %24 = vsyncadd [#allocation5], 0
      %s25 = sshll.u32 %s1, 4
      %s26 = int_to_ptr.hbm [resolvable:$true] %s25
      %s27 = sshll.u32 [#allocation4], 4
      %s28 = int_to_ptr.vmem [resolvable:$true] %s27
      %33 = dma.hbm_to_vmem [thread:$0]  %s26, 3072, %s28, [#allocation5], 64, 64, 4
    $region9: #{policy_forward.1} parent=1 // pred_fallthru
      _
    // Predicated region
    $region10: #{policy_forward.1} parent=1 // pred_check
      _
    $region11: #{policy_forward.1} parent=1 // pred_check_branch
      %35 = sbr.rel (0) target = $region13
    $region12: #{policy_forward.1} parent=1 // pred_region
      %37 = vsyncadd [#allocation5], 0
      %s39 = sshll.u32 %s2, 4
      %s40 = int_to_ptr.hbm [resolvable:$true] %s39
      %s41 = sshll.u32 [#allocation6], 4
      %s42 = int_to_ptr.vmem [resolvable:$true] %s41
      %44 = dma.hbm_to_vmem [thread:$0]  %s40, 128, %s42, [#allocation5]
    $region13: #{policy_forward.1} parent=1 // pred_fallthru
      _
    // Predicated region
    $region14: #{policy_forward.1} parent=1 // pred_check
      _
    $region15: #{policy_forward.1} parent=1 // pred_check_branch
      %46 = sbr.rel (0) target = $region17
    $region16: #{policy_forward.1} parent=1 // pred_region
      %48 = dma.done [#allocation3], 128
    $region17: #{policy_forward.1} parent=1 // pred_fallthru
      _
    // Predicated region
    $region18: #{policy_forward.1} parent=1 // pred_check
      _
    $region19: #{policy_forward.1} parent=1 // pred_check_branch
      %50 = sbr.rel (0) target = $region21
    $region20: #{policy_forward.1} parent=1 // pred_region
      %52 = dma.done [#allocation5], 3072
    $region21: #{policy_forward.1} parent=1 // pred_fallthru
      _
    // Predicated region
    $region22: #{policy_forward.1} parent=1 // pred_check
      _
    $region23: #{policy_forward.1} parent=1 // pred_check_branch
      %54 = sbr.rel (0) target = $region25
    $region24: #{policy_forward.1} parent=1 // pred_region
      %56 = dma.done [#allocation5], 128
    $region25: #{policy_forward.1} parent=1 // pred_fallthru
      _
    %v58 = vld [vmem:[#allocation2] sm:$0xff]
    %v59 = vpack.c.bf16 %v58, %v58
    %v60 = vld [vmem:[#allocation4] sm:$0xf]
    %v61 = vld [vmem:[#allocation4 + $0x4] sm:$0xf]
    %v62 = vld [vmem:[#allocation4 + $0x40] sm:$0xf]
    %v63 = vld [vmem:[#allocation4 + $0x44] sm:$0xf]
    %v64 = vld [vmem:[#allocation4 + $0x48] sm:$0xf]
    %v65 = vld [vmem:[#allocation4 + $0x4c] sm:$0xf]
    %v66 = vld [vmem:[#allocation4 + $0x50] sm:$0xf]
    %v67 = vld [vmem:[#allocation4 + $0x54] sm:$0xf]
    %v68 = vld [vmem:[#allocation4 + $0x58] sm:$0xf]
    %v69 = vld [vmem:[#allocation4 + $0x5c] sm:$0xf]
    %v70 = vld [vmem:[#allocation4 + $0x60] sm:$0xf]
    %v71 = vld [vmem:[#allocation4 + $0x64] sm:$0xf]
    %v72 = vld [vmem:[#allocation4 + $0x68] sm:$0xf]
    %v73 = vld [vmem:[#allocation4 + $0x6c] sm:$0xf]
    %v74 = vld [vmem:[#allocation4 + $0x70] sm:$0xf]
    %v75 = vld [vmem:[#allocation4 + $0x74] sm:$0xf]
    %v76 = vld [vmem:[#allocation4 + $0x78] sm:$0xf]
    %v77 = vld [vmem:[#allocation4 + $0x7c] sm:$0xf]
    %v78 = vld [vmem:[#allocation4 + $0x80] sm:$0xf]
    %v79 = vld [vmem:[#allocation4 + $0x84] sm:$0xf]
    %v80 = vld [vmem:[#allocation4 + $0x88] sm:$0xf]
    %v81 = vld [vmem:[#allocation4 + $0x8c] sm:$0xf]
    %v82 = vld [vmem:[#allocation4 + $0x90] sm:$0xf]
    %v83 = vld [vmem:[#allocation4 + $0x94] sm:$0xf]
    %v84 = vld [vmem:[#allocation4 + $0x98] sm:$0xf]
    %v85 = vld [vmem:[#allocation4 + $0x9c] sm:$0xf]
    %v86 = vld [vmem:[#allocation4 + $0xa0] sm:$0xf]
    %v87 = vld [vmem:[#allocation4 + $0xa4] sm:$0xf]
    %v88 = vld [vmem:[#allocation4 + $0xa8] sm:$0xf]
    %v89 = vld [vmem:[#allocation4 + $0xac] sm:$0xf]
    %v90 = vld [vmem:[#allocation4 + $0xb0] sm:$0xf]
    %v91 = vld [vmem:[#allocation4 + $0xb4] sm:$0xf]
    %v92 = vld [vmem:[#allocation4 + $0xb8] sm:$0xf]
    %v93 = vld [vmem:[#allocation4 + $0xbc] sm:$0xf]
    %v94 = vld [vmem:[#allocation6] sm:$0x1]
    %v95 = vld [vmem:[#allocation6 + $0x1] sm:$0x1]
    %v96 = vld [vmem:[#allocation6 + $0x2] sm:$0x1]
    %v97 = vperm.slane %v94, 0
    %v100 = vunpack.c.l.b16 %v60
    %v101 = vunpack.c.l.b16 %v61
    %v102 = vpack.c.b16 %v101, %v100
    %vm104 = vcmask 130048
    %v106 = vsel %vm104, %v59, 0
    %108 = vmatpush.bf16.msra.mxu0 0
    %109 = vmatpush.bf16.msra.mxu0 0
    %110 = vmatpush.bf16.msra.mxu0 0
    %111 = vmatpush.bf16.msra.mxu0 0
    %112 = vmatpush.bf16.msra.mxu0 0
    %113 = vmatpush.bf16.msra.mxu0 0
    %114 = vmatpush.bf16.msra.mxu0 0
    %115 = vmatpush.bf16.msra.mxu0 %v102
    %116 = vmatmul.bf16.gmra.mxu0 %v106
    %v117 = vpop.f32.mrf.mxu0
    %v118 = vadd.f32 %v97, %v117
    %v119 = vpop.f32.mrf.mxu0
    %120 = vdwg.mxu0
    %v121 = vtanh.pop %v118
    %v122 = vpack.c.bf16 %v121, %v121
    %v123 = vperm.slane %v95, 0
    %v140 = vunpack.c.l.b16 %v62
    %v141 = vunpack.c.l.b16 %v63
    %v142 = vunpack.c.l.b16 %v64
    %v143 = vunpack.c.l.b16 %v65
    %v144 = vunpack.c.l.b16 %v66
    %v145 = vunpack.c.l.b16 %v67
    %v146 = vunpack.c.l.b16 %v68
    %v147 = vunpack.c.l.b16 %v69
    %v148 = vunpack.c.l.b16 %v70
    %v149 = vunpack.c.l.b16 %v71
    %v150 = vunpack.c.l.b16 %v72
    %v151 = vunpack.c.l.b16 %v73
    %v152 = vunpack.c.l.b16 %v74
    %v153 = vunpack.c.l.b16 %v75
    %v154 = vunpack.c.l.b16 %v76
    %v155 = vunpack.c.l.b16 %v77
    %v156 = vpack.c.b16 %v141, %v140
    %v157 = vpack.c.b16 %v143, %v142
    %v158 = vpack.c.b16 %v145, %v144
    %v159 = vpack.c.b16 %v147, %v146
    %v160 = vpack.c.b16 %v149, %v148
    %v161 = vpack.c.b16 %v151, %v150
    %v162 = vpack.c.b16 %v153, %v152
    %v163 = vpack.c.b16 %v155, %v154
    %172 = vmatpush.bf16.msra.mxu0 %v163
    %173 = vmatpush.bf16.msra.mxu0 %v162
    %174 = vmatpush.bf16.msra.mxu0 %v161
    %175 = vmatpush.bf16.msra.mxu0 %v160
    %176 = vmatpush.bf16.msra.mxu0 %v159
    %177 = vmatpush.bf16.msra.mxu0 %v158
    %178 = vmatpush.bf16.msra.mxu0 %v157
    %179 = vmatpush.bf16.msra.mxu0 %v156
    %180 = vmatmul.bf16.gmra.mxu0 %v122
    %v181 = vpop.f32.mrf.mxu0
    %v182 = vadd.f32 %v123, %v181
    %v183 = vpop.f32.mrf.mxu0
    %184 = vdwg.mxu0
    %v185 = vtanh.pop %v182
    %v186 = vpack.c.bf16 %v185, %v185
    %v187 = vperm.slane %v96, 0
    %v204 = vunpack.c.l.b16 %v78
    %v205 = vunpack.c.l.b16 %v79
    %v206 = vunpack.c.l.b16 %v80
    %v207 = vunpack.c.l.b16 %v81
    %v208 = vunpack.c.l.b16 %v82
    %v209 = vunpack.c.l.b16 %v83
    %v210 = vunpack.c.l.b16 %v84
    %v211 = vunpack.c.l.b16 %v85
    %v212 = vunpack.c.l.b16 %v86
    %v213 = vunpack.c.l.b16 %v87
    %v214 = vunpack.c.l.b16 %v88
    %v215 = vunpack.c.l.b16 %v89
    %v216 = vunpack.c.l.b16 %v90
    %v217 = vunpack.c.l.b16 %v91
    %v218 = vunpack.c.l.b16 %v92
    %v219 = vunpack.c.l.b16 %v93
    %v220 = vpack.c.b16 %v205, %v204
    %v221 = vpack.c.b16 %v207, %v206
    %v222 = vpack.c.b16 %v209, %v208
    %v223 = vpack.c.b16 %v211, %v210
    %v224 = vpack.c.b16 %v213, %v212
    %v225 = vpack.c.b16 %v215, %v214
    %v226 = vpack.c.b16 %v217, %v216
    %v227 = vpack.c.b16 %v219, %v218
    %236 = vmatpush.bf16.msra.mxu0 %v227
    %237 = vmatpush.bf16.msra.mxu0 %v226
    %238 = vmatpush.bf16.msra.mxu0 %v225
    %239 = vmatpush.bf16.msra.mxu0 %v224
    %240 = vmatpush.bf16.msra.mxu0 %v223
    %241 = vmatpush.bf16.msra.mxu0 %v222
    %242 = vmatpush.bf16.msra.mxu0 %v221
    %243 = vmatpush.bf16.msra.mxu0 %v220
    %244 = vmatmul.bf16.gmra.mxu0 %v186
    %v245 = vpop.f32.mrf.mxu0
    %v246 = vadd.f32 %v187, %v245
    %v247 = vpop.f32.mrf.mxu0
    %248 = vdwg.mxu0
    %v249 = vlaneseq
    %v250 = vand.u32 %v249, 127
    %vm251 = vcmp.lt.s32.totalorder %v250, 4
    %vm252 = vcmp.eq.s32.totalorder %v250, 4
    %v253 = vsel %vm251, %v246, -1e+30
    %254 = vmax.xlane.f32.xlu0 %v253
    %v255 = vpop.xlane.xlu0 %254
    %v256 = vsub.f32 %v253, %v255
    %v257 = vmul.f32 %v256, 1.442695
    %v258 = vpow.pop %v257
    %259 = vadd.xlane.f32.xlu0 %v258
    %v260 = vpop.xlane.xlu0 %259
    %v261 = vrcp.pop %v260
    %v262 = vmul.f32 %v260, %v261
    %v263 = vsub.f32 1.0, %v262
    %v264 = vmul.f32 %v261, %v263
    %v265 = vadd.f32 %v261, %v264
    %vm266 = vweird.f32 %v260
    %vm267 = vweird.f32 %v261
    %vm268 = vmor %vm266, %vm267
    %v269 = vsel %vm268, %v261, %v265
    %v270 = vand.u32 2147483647, %v260
    %vm271 = vcmp.eq.f32.partialorder %v270, 8.507059e+37
    %v272 = vand.u32 %v260, 2147483648
    %v273 = vor.u32 1.1754944e-38, %v272
    %v274 = vsel %vm271, %v273, %v269
    %v275 = vmul.f32 %v258, %v274
    %v276 = vsel %vm252, %v246, 0.0
    %v277 = vadd.f32 %v275, %v276
    %278 = vst [vmem:[%s3] sm:$0xff] %v277
    // Predicated region
    $region26: #{policy_forward.1} parent=1 // pred_check
      _
    $region27: #{policy_forward.1} parent=1 // pred_check_branch
      %280 = sbr.rel (0) target = $region29
    $region28: #{policy_forward.1} parent=1 // pred_region
      _
    $region29: #{policy_forward.1} parent=1 // pred_fallthru
      _
    // Predicated region
    $region30: #{policy_forward.1} parent=1 // pred_check
      _
    $region31: #{policy_forward.1} parent=1 // pred_check_branch
      %282 = sbr.rel (0) target = $region33
    $region32: #{policy_forward.1} parent=1 // pred_region
      _
    $region33: #{policy_forward.1} parent=1 // pred_fallthru
      _
    %283 = vsyncpa [#allocation3], 1
    %284 = vsyncpa [#allocation5], 1

</llo_original>
